<compile_context>
chip_gen: v7x
topology: tpu7x:2x2x1
jax: 0.10.0
libtpu: 0.0.40
codegen_flags: <defaults>
</compile_context>

<pallas_src>
import functools

import jax
import jax.numpy as jnp
from jax.experimental import pallas as pl
from jax.experimental.pallas import tpu as pltpu


def _ls_ce_kernel(x_ref, t_ref, out_ref, *, eps, n_total, tile_n):
    """Writes this tile's partial sum of (lse_i - sum_c w[i,c] * x[i,c])."""
    i = pl.program_id(0)
    x = x_ref[...].astype(jnp.float32)                  # (TILE_N, C)
    t = t_ref[...]                                      # (TILE_N, 1) int32
    tn, c = x.shape

    # Mask rows past the true batch size (ragged last tile). Also forces any
    # garbage in the out-of-bounds part of a partial block to a finite value
    # so exp/log stay well defined.
    row_ids = i * tile_n + jax.lax.broadcasted_iota(jnp.int32, (tn, 1), 0)
    row_mask = row_ids < n_total                        # (TILE_N, 1)
    x = jnp.where(row_mask, x, 0.0)

    # Numerically stable log-sum-exp per row.
    row_max = jnp.max(x, axis=-1, keepdims=True)                       # (TILE_N,1)
    lse = row_max + jnp.log(
        jnp.sum(jnp.exp(x - row_max), axis=-1, keepdims=True))         # (TILE_N,1)

    # Fused smoothed-label weights: eps/C everywhere, +(1-eps) on the target.
    col_ids = jax.lax.broadcasted_iota(jnp.int32, (tn, c), 1)          # (TILE_N,C)
    w = jnp.where(col_ids == t,
                  (1.0 - eps) + eps / c,
                  eps / c).astype(jnp.float32)
    wx = jnp.sum(x * w, axis=-1, keepdims=True)                        # (TILE_N,1)

    partial = jnp.sum(jnp.where(row_mask, lse - wx, 0.0))              # scalar
    # Lane-dense (8, 128) store: avoids a masked (1,1) partial vst and keeps
    # each grid step writing an independent output block (parallelizable).
    out_ref[...] = jnp.full(out_ref.shape, partial, dtype=out_ref.dtype)


def _choose_tile_n(n, c, itemsize, max_tile_rows=None, vmem_tile_bytes=4 << 20):
    """Largest row tile with one logits buffer <= vmem_tile_bytes.

    Aligned to the dtype's native sublane packing (8 rows per packed tile for
    f32, 16 for bf16, 32 for int8) so partial blocks sit on tile boundaries.
    """
    align = 8 * max(1, 4 // max(1, itemsize))
    rows = max(1, vmem_tile_bytes // max(1, c * itemsize))
    if max_tile_rows is not None:
        rows = min(rows, max_tile_rows)
    if rows >= n:
        return n                              # single tile covering the full batch
    return max(align, (rows // align) * align)  # sublane-aligned partial tiles


def label_smoothing_cross_entropy(output, target, eps=0.1, *, max_tile_rows=None):
    """output: (N, C) float logits, target: (N,) int class indices -> scalar.

    Matches LabelSmoothingCrossEntropy.forward for targets in [0, C).
    """
    # TODO(synk): nll_loss's ignore_index=-100 semantics are not reproduced;
    # all targets are assumed to be valid class indices.
    n, c = output.shape
    itemsize = jnp.dtype(output.dtype).itemsize
    tile_n = _choose_tile_n(n, c, itemsize, max_tile_rows=max_tile_rows)
    # TODO(synk): for very large C (a single aligned-row tile exceeds the VMEM
    # budget, e.g. C >~ 128k f32) add a second grid axis over C with an
    # online (flash-style) running max / exp-sum / weighted-sum.
    num_tiles = pl.cdiv(n, tile_n)

    kernel = functools.partial(
        _ls_ce_kernel, eps=float(eps), n_total=n, tile_n=tile_n)

    cost = pl.CostEstimate(
        flops=6 * n * c,
        transcendentals=n * c + n,                 # exp per element + log per row
        bytes_accessed=n * c * itemsize + n * 4 + num_tiles * 8 * 128 * 4,
    )

    partials = pl.pallas_call(
        kernel,
        out_shape=jax.ShapeDtypeStruct((num_tiles * 8, 128), jnp.float32),
        grid=(num_tiles,),
        in_specs=[
            pl.BlockSpec((tile_n, c), lambda i: (i, 0)),   # logits row tile
            pl.BlockSpec((tile_n, 1), lambda i: (i, 0)),   # targets row tile
        ],
        out_specs=pl.BlockSpec((8, 128), lambda i: (i, 0)),
        compiler_params=pltpu.CompilerParams(
            dimension_semantics=("parallel",),   # shard tiles across TCs (v7x)
        ),
        cost_estimate=cost,
    )(output, target.reshape(n, 1).astype(jnp.int32))

    # Tiny final reduction in plain JAX: one partial scalar per tile.
    per_tile = partials.reshape(num_tiles, 8, 128)[:, 0, 0]
    return jnp.sum(per_tile) / jnp.float32(n)


def _reference(output, target, eps=0.1):
    # Pure-JAX reference of the PyTorch forward, for correctness checking.
    c = output.shape[-1]
    log_preds = jax.nn.log_softmax(output.astype(jnp.float32), axis=-1)
    loss = jnp.mean(-jnp.sum(log_preds, axis=-1))
    nll = jnp.mean(-jnp.take_along_axis(log_preds, target[:, None], axis=-1))
    return (1.0 - eps) * nll + eps * (loss / c)


if __name__ == "__main__":
    key = jax.random.PRNGKey(0)
    k_logits, k_target = jax.random.split(key)

    # Small demo: batch=20, classes=32. max_tile_rows=8 forces a 3-tile grid
    # with a ragged (masked) last tile so the tiled path is exercised.
    N, C = 20, 32
    logits = jax.random.normal(k_logits, (N, C), dtype=jnp.float32) * 3.0
    target = jax.random.randint(k_target, (N,), 0, C, dtype=jnp.int32)

    out = label_smoothing_cross_entropy(logits, target, eps=0.1, max_tile_rows=8)
    out = jax.block_until_ready(out)
    ref = _reference(logits, target, eps=0.1)
    assert jnp.allclose(out, ref, atol=1e-5, rtol=1e-5), (out, ref)

    # bf16 logits in HBM (halves DMA bytes); accumulation stays f32 in-kernel.
    # max_tile_rows=16 keeps the tile on a native bf16 (16, 128) sublane tile
    # and still exercises a ragged 2-tile grid.
    logits_bf16 = logits.astype(jnp.bfloat16)
    out_bf16 = label_smoothing_cross_entropy(
        logits_bf16, target, eps=0.1, max_tile_rows=16)
    out_bf16 = jax.block_until_ready(out_bf16)
    ref_bf16 = _reference(logits_bf16.astype(jnp.float32), target, eps=0.1)
    assert jnp.allclose(out_bf16, ref_bf16, atol=1e-4, rtol=1e-4), (out_bf16, ref_bf16)

    print("KERNEL_OK")
</pallas_src>

<mosaic_0001>
module attributes {stable_mosaic.version = 11 : i64} {
  func.func @_ls_ce_kernel(%arg0: i32, %arg1: memref<8x32xf32, #tpu.memory_space<vmem>>, %arg2: memref<8x1xi32, #tpu.memory_space<vmem>>, %arg3: memref<8x128xf32, #tpu.memory_space<vmem>>) attributes {dimension_semantics = [#tpu.dimension_semantics<parallel>], iteration_bounds = array<i64: 3>, scalar_prefetch = 0 : i64, scratch_operands = 0 : i64, tpu.core_type = #tpu.core_type<tc>, window_params = [{transform_indices = @transform_0, window_bounds = array<i64: 8, 32>}, {transform_indices = @transform_1, window_bounds = array<i64: 8, 1>}, {transform_indices = @transform_2, window_bounds = array<i64: 8, 128>}]} {
    %c0 = arith.constant 0 : index
    %c0_0 = arith.constant 0 : index
    %0 = vector.load %arg1[%c0, %c0_0] : memref<8x32xf32, #tpu.memory_space<vmem>>, vector<8x32xf32>
    %c0_1 = arith.constant 0 : index
    %c0_2 = arith.constant 0 : index
    %1 = vector.load %arg2[%c0_1, %c0_2] : memref<8x1xi32, #tpu.memory_space<vmem>>, vector<8x1xi32>
    %c8_i32 = arith.constant 8 : i32
    %2 = arith.muli %arg0, %c8_i32 : i32
    %3 = tpu.iota {dimensions = array<i32: 0>} : vector<8x1xi32>
    %4 = vector.broadcast %2 : i32 to vector<8x1xi32>
    %5 = arith.addi %4, %3 : vector<8x1xi32>
    %c20_i32 = arith.constant 20 : i32
    %6 = vector.broadcast %c20_i32 : i32 to vector<8x1xi32>
    %7 = arith.cmpi slt, %5, %6 : vector<8x1xi32>
    %cst = arith.constant 0.000000e+00 : f32
    %8 = vector.shape_cast %7 : vector<8x1xi1> to vector<8x1xi1>
    %9 = vector.broadcast %8 : vector<8x1xi1> to vector<8x32xi1>
    %10 = vector.broadcast %cst : f32 to vector<8x32xf32>
    %11 = arith.select %9, %0, %10 : vector<8x32xi1>, vector<8x32xf32>
    %cst_3 = arith.constant dense<0xFF800000> : vector<8xf32>
    %12 = vector.multi_reduction <maximumf>, %11, %cst_3 [1] : vector<8x32xf32> to vector<8xf32>
    %13 = vector.shape_cast %12 : vector<8xf32> to vector<8x1xf32>
    %14 = vector.broadcast %13 : vector<8x1xf32> to vector<8x32xf32>
    %15 = arith.subf %11, %14 : vector<8x32xf32>
    %16 = math.exp %15 : vector<8x32xf32>
    %cst_4 = arith.constant dense<0.000000e+00> : vector<8xf32>
    %17 = vector.multi_reduction <add>, %16, %cst_4 [1] : vector<8x32xf32> to vector<8xf32>
    %18 = vector.shape_cast %17 : vector<8xf32> to vector<8x1xf32>
    %19 = math.log %18 : vector<8x1xf32>
    %20 = arith.addf %13, %19 : vector<8x1xf32>
    %21 = tpu.iota {dimensions = array<i32: 1>} : vector<8x32xi32>
    %22 = vector.broadcast %1 : vector<8x1xi32> to vector<8x32xi32>
    %23 = arith.cmpi eq, %21, %22 : vector<8x32xi32>
    %cst_5 = arith.constant 0.903124988 : f32
    %cst_6 = arith.constant 3.125000e-03 : f32
    %24 = vector.broadcast %cst_5 : f32 to vector<8x32xf32>
    %25 = vector.broadcast %cst_6 : f32 to vector<8x32xf32>
    %26 = arith.select %23, %24, %25 : vector<8x32xi1>, vector<8x32xf32>
    %27 = arith.mulf %11, %26 : vector<8x32xf32>
    %cst_7 = arith.constant dense<0.000000e+00> : vector<8xf32>
    %28 = vector.multi_reduction <add>, %27, %cst_7 [1] : vector<8x32xf32> to vector<8xf32>
    %29 = vector.shape_cast %28 : vector<8xf32> to vector<8x1xf32>
    %30 = arith.subf %20, %29 : vector<8x1xf32>
    %cst_8 = arith.constant 0.000000e+00 : f32
    %31 = vector.broadcast %cst_8 : f32 to vector<8x1xf32>
    %32 = arith.select %7, %30, %31 : vector<8x1xi1>, vector<8x1xf32>
    %33 = vector.shape_cast %32 : vector<8x1xf32> to vector<1x8x1xf32>
    %cst_9 = arith.constant dense<0.000000e+00> : vector<1xf32>
    %34 = vector.multi_reduction <add>, %33, %cst_9 [1, 2] : vector<1x8x1xf32> to vector<1xf32>
    %35 = vector.shape_cast %34 : vector<1xf32> to vector<1x1x1xf32>
    %36 = vector.extract %35[0, 0, 0] : f32 from vector<1x1x1xf32>
    %37 = vector.broadcast %36 : f32 to vector<8x128xf32>
    %c0_10 = arith.constant 0 : index
    %c0_11 = arith.constant 0 : index
    %38 = vector.load %arg3[%c0_10, %c0_11] : memref<8x128xf32, #tpu.memory_space<vmem>>, vector<8x128xf32>
    tpu.vector_store %arg3[%c0_10, %c0_11], %37 {strides = array<i32>} : memref<8x128xf32, #tpu.memory_space<vmem>>, vector<8x128xf32>,
    return
  }
  func.func @transform_0(%arg0: i32) -> (i32, i32) {
    %c0_i32 = arith.constant 0 : i32
    %c0_i32_0 = arith.constant 0 : i32
    return %arg0, %c0_i32 : i32, i32
  }
  func.func @transform_1(%arg0: i32) -> (i32, i32) {
    %c0_i32 = arith.constant 0 : i32
    %c0_i32_0 = arith.constant 0 : i32
    return %arg0, %c0_i32 : i32, i32
  }
  func.func @transform_2(%arg0: i32) -> (i32, i32) {
    %c0_i32 = arith.constant 0 : i32
    %c0_i32_0 = arith.constant 0 : i32
    return %arg0, %c0_i32 : i32, i32
  }
}

</mosaic_0001>

<llo_original>
// kernel: tpu_custom_call.1
$region0: #{tpu_custom_call.1}
  #allocation0 [shape = 'u32[]', space=smem, size = 0x4, offset = 0x4, fixed_abs, tag = 'smem constant byte address 0x4 - core index']
  #allocation1 [shape = 'u32[144,128]{1,0:T(1,128)}', space=vmem, size = 0x12000, scoped, tag = 'internal scratch']
  %s0 = inlined_call_operand.vmem [shape: f32[20,32], index: 0, kind: input, shape index: {}]
  %s1 = inlined_call_operand.vmem [shape: s32[20,1], index: 1, kind: input, shape index: {}]
  %s2 = inlined_call_operand.hbm [shape: f32[24,128], index: 2, kind: output, shape index: {}]
  %s3 = sld [smem:[#allocation0]]
  $region41: #{tpu_custom_call.1} parent=0
    _
  %s5 = ssub.s32 1, %s3
  %s6 = scalar_select 0, %s5, %s3
  $region1: #{tpu_custom_call.1} parent=0
    #allocation2 [shape = 'u8[8192]{0}', space=vmem, size = 0x2000, scoped, tag = 'output window, operand 0']
    #allocation3 [shape = 's32[2]{0}', space=sflag, size = 0x8, scoped, tag = 'scoped memory for tpu_custom_call.1']
    %7 = vsyncpa [#allocation3], 0
    %s8 = scalar_lea.sflag [#allocation3], 1
    %9 = vsyncpa %s8, 0
    loop: start=0, step=1, limit=5
    $region2: #{tpu_custom_call.1} parent=1 // loop_pre_header
      _
    $region3: #{tpu_custom_call.1} parent=1 // loop_header
      %s11 = sphi 0, %s15
      %p12 = scmp.ge.s32.totalorder %s11, 5
      %s21 = sphi 0, %s23
      %s24 = sphi 0, %s21
      %s25 = sphi 0, %s24
      %s41 = sphi 0, %s25
      %s47 = sphi 0, %s49
      %s50 = sphi 0, %s47
      %s51 = sphi 0, %s50
      %s67 = sphi 0, %s51
      %s73 = sphi 0, %s75
      %s76 = sphi 0, %s73
      %s77 = sphi 0, %s76
      %s93 = sphi 0, %s77
    $region4: #{tpu_custom_call.1} parent=1 // loop_header_branch
      %14 = sbr.rel (%p12) target = $region8
    $region5: #{tpu_custom_call.1} parent=1 // loop_body
      %s16 = ssub.s32 %s11, 1
      %s17 = ssub.s32 %s11, 2
      %s18 = sadd.s32 %s11, 1
      %s19 = ssub.s32 %s11, %s18
      %p20 = scmp.eq.s32.totalorder %s19, 0
      %s22 = sadd.s32 %s21, 1
      %s23 = scalar_select %p20, %s21, %s22
      %p26 = pneg %p20
      %p27 = scmp.eq.s32.totalorder %s11, 2
      %p28 = por %p26, %p27
      %p29 = scmp.ne.s32.totalorder %s21, %s24
      %p30 = scmp.eq.s32.totalorder %s11, 0
      %p31 = por %p29, %p30
      %p32 = scmp.ne.s32.totalorder %s21, %s24
      %p33 = scmp.eq.s32.totalorder %s16, 2
      %p34 = por %p32, %p33
      %p35 = scmp.ne.s32.totalorder %s24, %s25
      %p36 = scmp.eq.s32.totalorder %s16, 0
      %p37 = por %p35, %p36
      %p38 = scmp.ne.s32.totalorder %s24, %s25
      %p39 = scmp.eq.s32.totalorder %s17, 2
      %p40 = por %p38, %p39
      %p42 = scmp.ne.s32.totalorder %s25, %s41
      %p43 = scmp.eq.s32.totalorder %s17, 0
      %p44 = por %p42, %p43
      %s45 = ssub.s32 %s11, %s18
      %p46 = scmp.eq.s32.totalorder %s45, 0
      %s48 = sadd.s32 %s47, 1
      %s49 = scalar_select %p46, %s47, %s48
      %p52 = pneg %p46
      %p53 = scmp.eq.s32.totalorder %s11, 2
      %p54 = por %p52, %p53
      %p55 = scmp.ne.s32.totalorder %s47, %s50
      %p56 = scmp.eq.s32.totalorder %s11, 0
      %p57 = por %p55, %p56
      %p58 = scmp.ne.s32.totalorder %s47, %s50
      %p59 = scmp.eq.s32.totalorder %s16, 2
      %p60 = por %p58, %p59
      %p61 = scmp.ne.s32.totalorder %s50, %s51
      %p62 = scmp.eq.s32.totalorder %s16, 0
      %p63 = por %p61, %p62
      %p64 = scmp.ne.s32.totalorder %s50, %s51
      %p65 = scmp.eq.s32.totalorder %s17, 2
      %p66 = por %p64, %p65
      %p68 = scmp.ne.s32.totalorder %s51, %s67
      %p69 = scmp.eq.s32.totalorder %s17, 0
      %p70 = por %p68, %p69
      %s71 = ssub.s32 %s11, %s18
      %p72 = scmp.eq.s32.totalorder %s71, 0
      %s74 = sadd.s32 %s73, 1
      %s75 = scalar_select %p72, %s73, %s74
      %p78 = pneg %p72
      %p79 = scmp.eq.s32.totalorder %s11, 2
      %p80 = por %p78, %p79
      %p81 = scmp.ne.s32.totalorder %s73, %s76
      %p82 = scmp.eq.s32.totalorder %s11, 0
      %p83 = por %p81, %p82
      %p84 = scmp.ne.s32.totalorder %s73, %s76
      %p85 = scmp.eq.s32.totalorder %s16, 2
      %p86 = por %p84, %p85
      %p87 = scmp.ne.s32.totalorder %s76, %s77
      %p88 = scmp.eq.s32.totalorder %s16, 0
      %p89 = por %p87, %p88
      %p90 = scmp.ne.s32.totalorder %s76, %s77
      %p91 = scmp.eq.s32.totalorder %s17, 2
      %p92 = por %p90, %p91
      %p94 = scmp.ne.s32.totalorder %s77, %s93
      %p95 = scmp.eq.s32.totalorder %s17, 0
      %p96 = por %p94, %p95
      %p97 = scmp.le.s32.totalorder 1, %s11
      %p98 = scmp.lt.s32.totalorder %s11, 4
      %p99 = pnand %p97, %p98
      %p100 = pneg %p99
      // Predicated region
      $region9: #{tpu_custom_call.1} parent=5 // pred_check
        _
      $region10: #{tpu_custom_call.1} parent=5 // pred_check_branch
        %102 = sbr.rel (%p99) target = $region12
      $region11: #{tpu_custom_call.1} parent=5 // pred_region
        %s103 = ssub.s32 %s11, 1
      $region12: #{tpu_custom_call.1} parent=5 // pred_fallthru
        _
      %p104 = scmp.lt.s32.totalorder %s11, 3
      // Predicated region
      $region13: #{tpu_custom_call.1} parent=5 // pred_check
        %p105 = pneg %p104
      $region14: #{tpu_custom_call.1} parent=5 // pred_check_branch
        %107 = sbr.rel (%p105) target = $region16
      $region15: #{tpu_custom_call.1} parent=5 // pred_region
        // Predicated region
        $region17: #{tpu_custom_call.1} parent=15 // pred_check
          %p108 = pneg %p31
        $region18: #{tpu_custom_call.1} parent=15 // pred_check_branch
          %110 = sbr.rel (%p108) target = $region20
        $region19: #{tpu_custom_call.1} parent=15 // pred_region
          %p111 = scmp.lt.s32.totalorder %s11, 2
          %s112 = scalar_select %p111, %s11, 2
          %s113 = smul.addr %s112, 8
          %s114 = scalar_lea.vmem %s0, %s113
        $region20: #{tpu_custom_call.1} parent=15 // pred_fallthru
          _
        // Predicated region
        $region21: #{tpu_custom_call.1} parent=15 // pred_check
          %p115 = pneg %p57
        $region22: #{tpu_custom_call.1} parent=15 // pred_check_branch
          %117 = sbr.rel (%p115) target = $region24
        $region23: #{tpu_custom_call.1} parent=15 // pred_region
          %p118 = scmp.lt.s32.totalorder %s11, 2
          %s119 = scalar_select %p118, %s11, 2
          %s120 = smul.addr %s119, 8
          %s121 = scalar_lea.vmem %s1, %s120
        $region24: #{tpu_custom_call.1} parent=15 // pred_fallthru
          _
      $region16: #{tpu_custom_call.1} parent=5 // pred_fallthru
        _
      %p122 = scmp.le.s32.totalorder 1, %s11
      %p123 = scmp.lt.s32.totalorder %s11, 4
      %p124 = pnand %p122, %p123
      %p125 = pneg %p124
      // Predicated region
      $region25: #{tpu_custom_call.1} parent=5 // pred_check
        _
      $region26: #{tpu_custom_call.1} parent=5 // pred_check_branch
        %127 = sbr.rel (%p124) target = $region28
      $region27: #{tpu_custom_call.1} parent=5 // pred_region
        %s128 = ssub.s32 %s11, 1
        %p129 = scmp.lt.s32.totalorder %s16, 2
        %s130 = scalar_select %p129, %s16, 2
        %s131 = smul.addr %s130, 8
        %s132 = scalar_lea.vmem %s0, %s131
        %p133 = pneg %p37
        %p134 = pneg %p34
        %p135 = scmp.lt.s32.totalorder %s16, 2
        %s136 = scalar_select %p135, %s16, 2
        %s137 = smul.addr %s136, 8
        %s138 = scalar_lea.vmem %s1, %s137
        %p139 = pneg %p63
        %p140 = pneg %p60
        %p141 = pneg %p89
        %p142 = pneg %p86
        %s143 = sand.u32 %s76, 1
        %s144 = scalar_lea.sflag [#allocation3], %s143
        %s145 = sand.u32 %s76, 1
        %s146 = smul.addr %s145, 8
        %s147 = scalar_lea.vmem [#allocation2], %s146
        %p148 = scmp.lt.s32.totalorder %s16, 2
        %s149 = scalar_select %p148, %s16, 2
        %s150 = smul.addr %s149, 8
        %s151 = scalar_lea.vmem %s0, %s150
        %p152 = scmp.lt.s32.totalorder %s16, 2
        %s153 = scalar_select %p152, %s16, 2
        %s154 = smul.addr %s153, 8
        %s155 = scalar_lea.vmem %s1, %s154
        %v156 = vld [vmem:[%s151] sm:$0xff]
        %v157 = vld [vmem:[%s155] sm:$0xff]
        %s158 = smul.u32 %s16, 8
        %v159 = vlaneseq
        %v160 = vshrl.u32 %v159, 7
        %v161 = vstv %s158
        %v162 = vadd.s32 %v161, %v160
        %vm163 = vcmp.lt.s32.totalorder %v162, 20
        %v164 = vsel %vm163, 1, 0
        %vm165 = vcmp.eq.s32.totalorder %v164, 1
        %v166 = vsel %vm165, %v156, 0.0
        %vm167 = vcmask 261120
        %v168 = vsel %vm167, %v166, -inf
        %169 = vmax.xlane.f32.xlu0 %v168
        %v170 = vpop.xlane.xlu0 %169
        %v171 = vsub.f32 %v166, %v170
        %v172 = vmul.f32 %v171, 1.442695
        %v173 = vpow.pop %v172
        %v174 = vsel %vm167, %v173, 0.0
        %175 = vadd.xlane.f32.xlu0 %v174
        %v176 = vpop.xlane.xlu0 %175
        %v177 = vlog2.pop %v176
        %v178 = vmul.f32 %v177, 0.6931472
        %v179 = vadd.f32 %v170, %v178
        %v180 = vlaneseq
        %v181 = vand.u32 %v180, 127
        %182 = vset.pattern.permute.xlu0 0
        %183 = vperm.xlu0 %182, %v157
        %v184 = vpop.permute.xlu0 %183
        %vm185 = vcmp.eq.s32.totalorder %v181, %v184
        %v186 = vsel %vm185, 0.903125, 0.003125
        %v187 = vmul.f32 %v166, %v186
        %v188 = vsel %vm167, %v187, 0.0
        %189 = vadd.xlane.f32.xlu0 %v188
        %v190 = vpop.xlane.xlu0 %189
        %v191 = vsub.f32 %v179, %v190
        %v192 = vsel %vm163, %v191, 0.0
        %vm193 = vcmask 7168
        %v194 = vsel %vm193, %v192, 0.0
        %195 = vadd.xlane.f32.xlu0 %v194
        %v196 = vpop.xlane.xlu0 %195
        %v197 = vrot.slane %v196, 4
        %v198 = vadd.f32 %v196, %v197
        %v199 = vrot.slane %v198, 2
        %v200 = vadd.f32 %v198, %v199
        %v201 = vrot.slane %v200, 1
        %v202 = vadd.f32 %v200, %v201
        %s203 = vtos %v202
        %v204 = vstv %s203
        %205 = vst [vmem:[%s147] sm:$0xff] %v204
        %s206 = sand.u32 %s76, 1
        %s207 = scalar_lea.sflag [#allocation3], %s206
        %s208 = sand.u32 %s76, 1
        %s209 = smul.addr %s208, 8
        %s210 = scalar_lea.vmem [#allocation2], %s209
        // Predicated region
        $region29: #{tpu_custom_call.1} parent=27 // pred_check
          %p211 = pneg %p86
        $region30: #{tpu_custom_call.1} parent=27 // pred_check_branch
          %213 = sbr.rel (%p211) target = $region32
        $region31: #{tpu_custom_call.1} parent=27 // pred_region
          %s215 = ssub.s32 128, 128
          %216 = vsyncadd %s207, %s215
          %s217 = smul.addr %s16, 128
          %s218 = scalar_lea.hbm %s2, %s217
          %s220 = sshll.u32 %s210, 4
          %s221 = int_to_ptr.vmem [resolvable:$true] %s220
          %223 = dma.vmem_to_hbm [thread:$0]  %s221, 128, %s218, %s207
        $region32: #{tpu_custom_call.1} parent=27 // pred_fallthru
          _
      $region28: #{tpu_custom_call.1} parent=5 // pred_fallthru
        _
      %p224 = scmp.le.s32.totalorder 2, %s11
      // Predicated region
      $region33: #{tpu_custom_call.1} parent=5 // pred_check
        %p225 = pneg %p224
      $region34: #{tpu_custom_call.1} parent=5 // pred_check_branch
        %227 = sbr.rel (%p225) target = $region36
      $region35: #{tpu_custom_call.1} parent=5 // pred_region
        %s228 = ssub.s32 %s11, 2
        // Predicated region
        $region37: #{tpu_custom_call.1} parent=35 // pred_check
          %p229 = pneg %p92
        $region38: #{tpu_custom_call.1} parent=35 // pred_check_branch
          %231 = sbr.rel (%p229) target = $region40
        $region39: #{tpu_custom_call.1} parent=35 // pred_region
          %s232 = sand.u32 %s77, 1
          %s233 = scalar_lea.sflag [#allocation3], %s232
          %s234 = sand.u32 %s77, 1
          %s235 = smul.addr %s234, 8
          %s236 = scalar_lea.vmem [#allocation2], %s235
          %237 = dma.done %s233, 128
        $region40: #{tpu_custom_call.1} parent=35 // pred_fallthru
          _
      $region36: #{tpu_custom_call.1} parent=5 // pred_fallthru
        _
    $region6: #{tpu_custom_call.1} parent=1 // loop_footer
      %s15 = sadd.s32 1, %s11
    $region7: #{tpu_custom_call.1} parent=1 // loop_footer_branch
      %10 = sbr.rel target = $region3
    $region8: #{tpu_custom_call.1} parent=1 // loop_exit
      _
    %238 = vsyncpa [#allocation3], 1
    %s239 = scalar_lea.sflag [#allocation3], 1
    %240 = vsyncpa %s239, 1

</llo_original>
